<compile_context>
chip_gen: v5e
topology: v5e:2x2
jax: 0.10.0
libtpu: 0.0.40
codegen_flags: <defaults>
</compile_context>

<pallas_src>
import jax
import jax.numpy as jnp
from jax.experimental import pallas as pl
from jax.experimental.pallas import tpu as pltpu

IN = 16   # fc1 in_features
H1 = 16   # fc1 out_features
H2 = 16   # fc2 out_features

_PR = jax.lax.Precision.HIGHEST   # true-f32 matmuls (K=16, negligible MXU cost)


def _mlp_kernel(x_ref, w_ref, b12_ref, b3_ref, o_ref):
    """One batch tile of the 3-layer MLP.

    x_ref  : [bt, 16]        row-major input tile (exactly as stored in HBM)
    w_ref  : [16+16+N8, 16]  packed PyTorch-layout weights ([out, in]); fc3 rows padded to N8
    b12_ref: [32, 1]         fc1/fc2 biases (feature-major column)
    b3_ref : [1, N]          fc3 bias (row)
    o_ref  : [bt, N]         row-major output tile
    """
    n_out = o_ref.shape[1]

    # Feature-major activations: batch on the lane axis (lane-dense, ~16 vregs per
    # activation). The transpose runs on the otherwise-idle XLU.
    xt = jnp.transpose(x_ref[...])                                  # [16, bt]

    w1 = w_ref[0:H1, :]
    w2 = w_ref[H1:H1 + H2, :]
    w3 = w_ref[H1 + H2:, :]                                         # [N8, 16]
    b1 = b12_ref[0:H1, :]
    b2 = b12_ref[H1:H1 + H2, :]

    # y = W @ x + b on the feature-major layout  <=>  PyTorch y = x @ W.T + b
    h1 = jnp.dot(w1, xt, precision=_PR, preferred_element_type=jnp.float32) + b1
    h1 = jnp.maximum(h1, 0.0)                                       # R1
    h2 = jnp.dot(w2, h1, precision=_PR, preferred_element_type=jnp.float32) + b2
    h2 = jnp.maximum(h2, 0.0)                                       # R2
    out_fm = jnp.dot(w3, h2, precision=_PR, preferred_element_type=jnp.float32)  # [N8, bt]

    # Back to batch-major and store: the (bt, N) block keeps the HBM writeback
    # contiguous and avoids an extra output transpose pass in the wrapper.
    out_bm = jnp.transpose(out_fm)[:, :n_out] + b3_ref[...]         # [bt, N]
    o_ref[...] = out_bm.astype(o_ref.dtype)


def model_fit_ss_forward(x, params, bt_max=8192):
    """Forward pass of Model_Fit_ss. x: [B, 16]; params PyTorch-shaped (w: [out,in], b: [out])."""
    w1, b1 = params["w1"], params["b1"]
    w2, b2 = params["w2"], params["b2"]
    w3, b3 = params["w3"], params["b3"]
    N = w3.shape[0]
    B = x.shape[0]

    # Pad fc3 rows up to a multiple of 8 (sublane alignment). Padded rows are zero
    # and get sliced away inside the kernel before the store.
    N8 = -(-N // 8) * 8
    w3p = jnp.pad(w3.astype(jnp.float32), ((0, N8 - N), (0, 0)))

    # Packed, VMEM-resident weight / bias slabs (constant index_maps).
    w_slab = jnp.concatenate(
        [w1.astype(jnp.float32), w2.astype(jnp.float32), w3p], axis=0)      # [32+N8, 16]
    b12 = jnp.concatenate([b1, b2], axis=0).astype(jnp.float32)[:, None]    # [32, 1]
    b3_row = b3.astype(jnp.float32)[None, :]                                # [1, N]

    # Pad the batch only up to a multiple of 128 (lane width), then derive the tile
    # size so over-padding stays small; force >=2 steps so v7x megacore is used.
    B128 = -(-B // 128) * 128
    g = -(-B128 // min(bt_max, B128))          # number of grid steps
    if B128 >= 256:
        g = max(g, 2)
    per = -(-B128 // g)                        # ceil(rows per step)
    bt = -(-per // 128) * 128                  # rounded up to a lane multiple
    B_pad = g * bt

    x_pad = x.astype(jnp.float32)
    if B_pad != B:
        x_pad = jnp.pad(x_pad, ((0, B_pad - B), (0, 0)))

    flops = 2 * B_pad * (IN * H1 + H1 * H2 + H2 * N8)
    bytes_accessed = (x_pad.size + B_pad * N + w_slab.size + b12.size + b3_row.size) * 4

    out = pl.pallas_call(
        _mlp_kernel,
        out_shape=jax.ShapeDtypeStruct((B_pad, N), jnp.float32),
        grid=(g,),
        in_specs=[
            pl.BlockSpec((bt, IN), lambda i: (i, 0)),        # batch tile streams over B
            pl.BlockSpec(w_slab.shape, lambda i: (0, 0)),    # weights stay resident
            pl.BlockSpec(b12.shape, lambda i: (0, 0)),       # biases stay resident
            pl.BlockSpec(b3_row.shape, lambda i: (0, 0)),
        ],
        out_specs=pl.BlockSpec((bt, N), lambda i: (i, 0)),   # contiguous row-major stores
        compiler_params=pltpu.CompilerParams(
            dimension_semantics=("parallel",),               # split batch tiles across v7x TCs
            vmem_limit_bytes=48 * 1024 * 1024,               # (bt,*) tiles lane-pad in VMEM
        ),
        cost_estimate=pl.CostEstimate(
            flops=flops, transcendentals=0, bytes_accessed=bytes_accessed),
    )(x_pad, w_slab, b12, b3_row)

    return out[:B, :]                                        # [B, N]


def init_params(key, N):
    """PyTorch nn.Linear-style shapes: weight [out, in], bias [out]."""
    ks = jax.random.split(key, 6)

    def lin(kw, kb, fan_in, fan_out):
        bound = 1.0 / jnp.sqrt(fan_in)
        w = jax.random.uniform(kw, (fan_out, fan_in), jnp.float32, -bound, bound)
        b = jax.random.uniform(kb, (fan_out,), jnp.float32, -bound, bound)
        return w, b

    w1, b1 = lin(ks[0], ks[1], IN, H1)
    w2, b2 = lin(ks[2], ks[3], H1, H2)
    w3, b3 = lin(ks[4], ks[5], H2, N)
    return {"w1": w1, "b1": b1, "w2": w2, "b2": b2, "w3": w3, "b3": b3}


def reference_forward(x, p):
    h1 = jnp.maximum(jnp.dot(x, p["w1"].T, precision=_PR) + p["b1"], 0.0)
    h2 = jnp.maximum(jnp.dot(h1, p["w2"].T, precision=_PR) + p["b2"], 0.0)
    return jnp.dot(h2, p["w3"].T, precision=_PR) + p["b3"]


if __name__ == "__main__":
    key = jax.random.PRNGKey(0)
    N = 4     # fc3 output features
    B = 37    # deliberately not a multiple of 128: exercises the pad + slice path

    kx, kp = jax.random.split(key)
    x = jax.random.normal(kx, (B, IN), jnp.float32)
    params = init_params(kp, N)

    out = model_fit_ss_forward(x, params)
    out = jax.block_until_ready(out)

    ref = reference_forward(x, params)
    assert out.shape == (B, N), out.shape
    assert jnp.allclose(out, ref, atol=1e-4, rtol=1e-4), float(jnp.max(jnp.abs(out - ref)))

    print("KERNEL_OK")
</pallas_src>

<mosaic_0001>
module attributes {stable_mosaic.version = 11 : i64} {
  func.func @_mlp_kernel(%arg0: i32, %arg1: memref<128x16xf32, #tpu.memory_space<vmem>>, %arg2: memref<40x16xf32, #tpu.memory_space<vmem>>, %arg3: memref<32x1xf32, #tpu.memory_space<vmem>>, %arg4: memref<1x4xf32, #tpu.memory_space<vmem>>, %arg5: memref<128x4xf32, #tpu.memory_space<vmem>>) attributes {dimension_semantics = [#tpu.dimension_semantics<parallel>], iteration_bounds = array<i64: 1>, scalar_prefetch = 0 : i64, scratch_operands = 0 : i64, tpu.core_type = #tpu.core_type<tc>, window_params = [{transform_indices = @transform_0, window_bounds = array<i64: 128, 16>}, {pipeline_mode = #tpu.pipeline_mode<synchronous>, transform_indices = @transform_1, window_bounds = array<i64: 40, 16>}, {pipeline_mode = #tpu.pipeline_mode<synchronous>, transform_indices = @transform_2, window_bounds = array<i64: 32, 1>}, {pipeline_mode = #tpu.pipeline_mode<synchronous>, transform_indices = @transform_3, window_bounds = array<i64: 1, 4>}, {transform_indices = @transform_4, window_bounds = array<i64: 128, 4>}]} {
    %c0 = arith.constant 0 : index
    %c0_0 = arith.constant 0 : index
    %0 = vector.load %arg1[%c0, %c0_0] : memref<128x16xf32, #tpu.memory_space<vmem>>, vector<128x16xf32>
    %1 = tpu.transpose %0, [1, 0] : vector<128x16xf32> -> vector<16x128xf32>
    %c0_1 = arith.constant 0 : index
    %c0_2 = arith.constant 0 : index
    %2 = vector.load %arg2[%c0_1, %c0_2] : memref<40x16xf32, #tpu.memory_space<vmem>>, vector<16x16xf32>
    %c16 = arith.constant 16 : index
    %c0_3 = arith.constant 0 : index
    %3 = vector.load %arg2[%c16, %c0_3] : memref<40x16xf32, #tpu.memory_space<vmem>>, vector<16x16xf32>
    %c32 = arith.constant 32 : index
    %c0_4 = arith.constant 0 : index
    %4 = vector.load %arg2[%c32, %c0_4] : memref<40x16xf32, #tpu.memory_space<vmem>>, vector<8x16xf32>
    %c0_5 = arith.constant 0 : index
    %c0_6 = arith.constant 0 : index
    %5 = vector.load %arg3[%c0_5, %c0_6] : memref<32x1xf32, #tpu.memory_space<vmem>>, vector<16x1xf32>
    %c16_7 = arith.constant 16 : index
    %c0_8 = arith.constant 0 : index
    %6 = vector.load %arg3[%c16_7, %c0_8] : memref<32x1xf32, #tpu.memory_space<vmem>>, vector<16x1xf32>
    %cst = arith.constant dense<0.000000e+00> : vector<16x128xf32>
    %7 = tpu.matmul %2, %1, %cst {dimension_numbers = #tpu.dot_dimension_numbers<[1], [0], [0], [1], [0, 0, 1, 1], [], []>, precision = #tpu.contract_precision<fp32>} : vector<16x16xf32>, vector<16x128xf32>, vector<16x128xf32> -> vector<16x128xf32>
    %8 = vector.broadcast %5 : vector<16x1xf32> to vector<16x128xf32>
    %9 = arith.addf %7, %8 : vector<16x128xf32>
    %cst_9 = arith.constant 0.000000e+00 : f32
    %10 = vector.broadcast %cst_9 : f32 to vector<16x128xf32>
    %11 = arith.maximumf %9, %10 : vector<16x128xf32>
    %cst_10 = arith.constant dense<0.000000e+00> : vector<16x128xf32>
    %12 = tpu.matmul %3, %11, %cst_10 {dimension_numbers = #tpu.dot_dimension_numbers<[1], [0], [0], [1], [0, 0, 1, 1], [], []>, precision = #tpu.contract_precision<fp32>} : vector<16x16xf32>, vector<16x128xf32>, vector<16x128xf32> -> vector<16x128xf32>
    %13 = vector.broadcast %6 : vector<16x1xf32> to vector<16x128xf32>
    %14 = arith.addf %12, %13 : vector<16x128xf32>
    %cst_11 = arith.constant 0.000000e+00 : f32
    %15 = vector.broadcast %cst_11 : f32 to vector<16x128xf32>
    %16 = arith.maximumf %14, %15 : vector<16x128xf32>
    %cst_12 = arith.constant dense<0.000000e+00> : vector<8x128xf32>
    %17 = tpu.matmul %4, %16, %cst_12 {dimension_numbers = #tpu.dot_dimension_numbers<[1], [0], [0], [1], [0, 0, 1, 1], [], []>, precision = #tpu.contract_precision<fp32>} : vector<8x16xf32>, vector<16x128xf32>, vector<8x128xf32> -> vector<8x128xf32>
    %18 = tpu.transpose %17, [1, 0] : vector<8x128xf32> -> vector<128x8xf32>
    %19 = vector.extract_strided_slice %18 {offsets = [0, 0], sizes = [128, 4], strides = [1, 1]} : vector<128x8xf32> to vector<128x4xf32>
    %c0_13 = arith.constant 0 : index
    %c0_14 = arith.constant 0 : index
    %20 = vector.load %arg4[%c0_13, %c0_14] : memref<1x4xf32, #tpu.memory_space<vmem>>, vector<1x4xf32>
    %21 = vector.broadcast %20 : vector<1x4xf32> to vector<128x4xf32>
    %22 = arith.addf %19, %21 : vector<128x4xf32>
    %c0_15 = arith.constant 0 : index
    %c0_16 = arith.constant 0 : index
    %23 = vector.load %arg5[%c0_15, %c0_16] : memref<128x4xf32, #tpu.memory_space<vmem>>, vector<128x4xf32>
    tpu.vector_store %arg5[%c0_15, %c0_16], %22 {strides = array<i32>} : memref<128x4xf32, #tpu.memory_space<vmem>>, vector<128x4xf32>,
    return
  }
  func.func @transform_0(%arg0: i32) -> (i32, i32) {
    %c0_i32 = arith.constant 0 : i32
    %c0_i32_0 = arith.constant 0 : i32
    return %arg0, %c0_i32 : i32, i32
  }
  func.func @transform_1(%arg0: i32) -> (i32, i32) {
    %c0_i32 = arith.constant 0 : i32
    %c0_i32_0 = arith.constant 0 : i32
    %c0_i32_1 = arith.constant 0 : i32
    return %c0_i32, %c0_i32_0 : i32, i32
  }
  func.func @transform_2(%arg0: i32) -> (i32, i32) {
    %c0_i32 = arith.constant 0 : i32
    %c0_i32_0 = arith.constant 0 : i32
    %c0_i32_1 = arith.constant 0 : i32
    return %c0_i32, %c0_i32_0 : i32, i32
  }
  func.func @transform_3(%arg0: i32) -> (i32, i32) {
    %c0_i32 = arith.constant 0 : i32
    %c0_i32_0 = arith.constant 0 : i32
    %c0_i32_1 = arith.constant 0 : i32
    return %c0_i32, %c0_i32_0 : i32, i32
  }
  func.func @transform_4(%arg0: i32) -> (i32, i32) {
    %c0_i32 = arith.constant 0 : i32
    %c0_i32_0 = arith.constant 0 : i32
    return %arg0, %c0_i32 : i32, i32
  }
}

</mosaic_0001>

<llo_original>
// kernel: tpu_custom_call.1
$region0: #{tpu_custom_call.1}
  #allocation0 [shape = 'u32[]', space=smem, size = 0x4, offset = 0x4, fixed_abs, tag = 'smem constant byte address 0x4 - core index']
  #allocation1 [shape = 'u32[72,128]{1,0:T(1,128)}', space=vmem, size = 0x9000, scoped, tag = 'internal scratch']
  %s0 = inlined_call_operand.vmem [shape: f32[128,16], index: 0, kind: input, shape index: {}]
  %s1 = inlined_call_operand.vmem [shape: f32[40,16], index: 1, kind: input, shape index: {}]
  %s2 = inlined_call_operand.vmem [shape: f32[32,1], index: 2, kind: input, shape index: {}]
  %s3 = inlined_call_operand.vmem [shape: f32[1,4], index: 3, kind: input, shape index: {}]
  %s4 = inlined_call_operand.vmem [shape: f32[128,4], index: 4, kind: output, shape index: {}]
  %s5 = sld [smem:[#allocation0]]
  $region26: #{tpu_custom_call.1} parent=0
    _
  %s7 = ssub.s32 1, %s5
  %s8 = scalar_select 0, %s7, %s5
  // Predicated region
  $region2: #{tpu_custom_call.1} parent=0 // pred_check
    _
  $region3: #{tpu_custom_call.1} parent=0 // pred_check_branch
    %10 = sbr.rel (0) target = $region5
  $region4: #{tpu_custom_call.1} parent=0 // pred_region
    _
  $region5: #{tpu_custom_call.1} parent=0 // pred_fallthru
    _
  // Predicated region
  $region6: #{tpu_custom_call.1} parent=0 // pred_check
    _
  $region7: #{tpu_custom_call.1} parent=0 // pred_check_branch
    %12 = sbr.rel (0) target = $region9
  $region8: #{tpu_custom_call.1} parent=0 // pred_region
    _
  $region9: #{tpu_custom_call.1} parent=0 // pred_fallthru
    _
  // Predicated region
  $region10: #{tpu_custom_call.1} parent=0 // pred_check
    _
  $region11: #{tpu_custom_call.1} parent=0 // pred_check_branch
    %14 = sbr.rel (0) target = $region13
  $region12: #{tpu_custom_call.1} parent=0 // pred_region
    _
  $region13: #{tpu_custom_call.1} parent=0 // pred_fallthru
    _
  // Predicated region
  $region14: #{tpu_custom_call.1} parent=0 // pred_check
    _
  $region15: #{tpu_custom_call.1} parent=0 // pred_check_branch
    %16 = sbr.rel (0) target = $region17
  $region16: #{tpu_custom_call.1} parent=0 // pred_region
    _
  $region17: #{tpu_custom_call.1} parent=0 // pred_fallthru
    _
  %v17 = vld [vmem:[%s0] sm:$0xff]
  %v18 = vld [vmem:[%s0 + $0x8] sm:$0xff]
  %v19 = vld [vmem:[%s0 + $0x10] sm:$0xff]
  %v20 = vld [vmem:[%s0 + $0x18] sm:$0xff]
  %v21 = vld [vmem:[%s0 + $0x20] sm:$0xff]
  %v22 = vld [vmem:[%s0 + $0x28] sm:$0xff]
  %v23 = vld [vmem:[%s0 + $0x30] sm:$0xff]
  %v24 = vld [vmem:[%s0 + $0x38] sm:$0xff]
  %v25 = vld [vmem:[%s0 + $0x40] sm:$0xff]
  %v26 = vld [vmem:[%s0 + $0x48] sm:$0xff]
  %v27 = vld [vmem:[%s0 + $0x50] sm:$0xff]
  %v28 = vld [vmem:[%s0 + $0x58] sm:$0xff]
  %v29 = vld [vmem:[%s0 + $0x60] sm:$0xff]
  %v30 = vld [vmem:[%s0 + $0x68] sm:$0xff]
  %v31 = vld [vmem:[%s0 + $0x70] sm:$0xff]
  %v32 = vld [vmem:[%s0 + $0x78] sm:$0xff]
  %v33 = vld [vmem:[%s1] sm:$0xff]
  %v34 = vld [vmem:[%s1 + $0x8] sm:$0xff]
  %v35 = vld [vmem:[%s1 + $0x10] sm:$0xff]
  %v36 = vld [vmem:[%s1 + $0x18] sm:$0xff]
  %v37 = vld [vmem:[%s1 + $0x20] sm:$0xff]
  %v38 = vld [vmem:[%s2] sm:$0xff]
  %v39 = vld [vmem:[%s2 + $0x8] sm:$0xff]
  %v40 = vld [vmem:[%s2 + $0x10] sm:$0xff]
  %v41 = vld [vmem:[%s2 + $0x18] sm:$0xff]
  %43 = vset.pattern.permute.xlu0 0
  %44 = vperm.xlu0 %43, %v38
  %v45 = vpop.permute.xlu0 %44
  %48 = vset.pattern.permute.xlu0 0
  %49 = vperm.xlu0 %48, %v39
  %v50 = vpop.permute.xlu0 %49
  %vm52 = vcmask 130048
  %v54 = vsel %vm52, %v33, 0
  %v57 = vsel %vm52, %v34, 0
  %v60 = vsel %vm52, %v17, 0
  %v63 = vsel %vm52, %v18, 0
  %v66 = vsel %vm52, %v19, 0
  %v69 = vsel %vm52, %v20, 0
  %v72 = vsel %vm52, %v21, 0
  %v75 = vsel %vm52, %v22, 0
  %v78 = vsel %vm52, %v23, 0
  %v81 = vsel %vm52, %v24, 0
  %v84 = vsel %vm52, %v25, 0
  %v87 = vsel %vm52, %v26, 0
  %v90 = vsel %vm52, %v27, 0
  %v93 = vsel %vm52, %v28, 0
  %v96 = vsel %vm52, %v29, 0
  %v99 = vsel %vm52, %v30, 0
  %v102 = vsel %vm52, %v31, 0
  %v105 = vsel %vm52, %v32, 0
  %v107 = vand.u32 %v105, 4294901760
  %108 = vmatpush.xpose.msra.mxu0 %v107
  %v109 = vand.u32 %v102, 4294901760
  %110 = vmatpush.xpose.msra.mxu0 %v109
  %v111 = vand.u32 %v99, 4294901760
  %112 = vmatpush.xpose.msra.mxu0 %v111
  %v113 = vand.u32 %v96, 4294901760
  %114 = vmatpush.xpose.msra.mxu0 %v113
  %v115 = vand.u32 %v93, 4294901760
  %116 = vmatpush.xpose.msra.mxu0 %v115
  %v117 = vand.u32 %v90, 4294901760
  %118 = vmatpush.xpose.msra.mxu0 %v117
  %v119 = vand.u32 %v87, 4294901760
  %120 = vmatpush.xpose.msra.mxu0 %v119
  %v121 = vand.u32 %v84, 4294901760
  %122 = vmatpush.xpose.msra.mxu0 %v121
  %v123 = vand.u32 %v81, 4294901760
  %124 = vmatpush.xpose.msra.mxu0 %v123
  %v125 = vand.u32 %v78, 4294901760
  %126 = vmatpush.xpose.msra.mxu0 %v125
  %v127 = vand.u32 %v75, 4294901760
  %128 = vmatpush.xpose.msra.mxu0 %v127
  %v129 = vand.u32 %v72, 4294901760
  %130 = vmatpush.xpose.msra.mxu0 %v129
  %v131 = vand.u32 %v69, 4294901760
  %132 = vmatpush.xpose.msra.mxu0 %v131
  %v133 = vand.u32 %v66, 4294901760
  %134 = vmatpush.xpose.msra.mxu0 %v133
  %v135 = vand.u32 %v63, 4294901760
  %136 = vmatpush.xpose.msra.mxu0 %v135
  %v137 = vand.u32 %v60, 4294901760
  %138 = vmatpush.xpose.msra.mxu0 %v137
  %v139 = vand.u32 %v54, 4294901760
  %v140 = vsub.f32 %v54, %v139
  %v141 = vand.u32 %v140, 4294901760
  %v142 = vsub.f32 %v140, %v141
  %v143 = vand.u32 %v142, 4294901760
  %144 = vmatmul.f32.gmra.mxu0 %v143
  %v145 = vpop.f32.mrf.mxu0
  %v146 = vadd.f32 %v45, %v145
  %v147 = vand.u32 %v57, 4294901760
  %v148 = vsub.f32 %v57, %v147
  %v149 = vand.u32 %v148, 4294901760
  %v150 = vsub.f32 %v148, %v149
  %v151 = vand.u32 %v150, 4294901760
  %152 = vmatmul.f32.gmra.mxu0 %v151
  %v153 = vpop.f32.mrf.mxu0
  %v154 = vadd.f32 %v50, %v153
  %155 = vdwg.mxu0
  %v156 = vand.u32 %v105, 4294901760
  %v157 = vsub.f32 %v105, %v156
  %v158 = vand.u32 %v157, 4294901760
  %v159 = vsub.f32 %v157, %v158
  %v160 = vand.u32 %v159, 4294901760
  %161 = vmatpush.xpose.msra.mxu0 %v160
  %v162 = vand.u32 %v102, 4294901760
  %v163 = vsub.f32 %v102, %v162
  %v164 = vand.u32 %v163, 4294901760
  %v165 = vsub.f32 %v163, %v164
  %v166 = vand.u32 %v165, 4294901760
  %167 = vmatpush.xpose.msra.mxu0 %v166
  %v168 = vand.u32 %v99, 4294901760
  %v169 = vsub.f32 %v99, %v168
  %v170 = vand.u32 %v169, 4294901760
  %v171 = vsub.f32 %v169, %v170
  %v172 = vand.u32 %v171, 4294901760
  %173 = vmatpush.xpose.msra.mxu0 %v172
  %v174 = vand.u32 %v96, 4294901760
  %v175 = vsub.f32 %v96, %v174
  %v176 = vand.u32 %v175, 4294901760
  %v177 = vsub.f32 %v175, %v176
  %v178 = vand.u32 %v177, 4294901760
  %179 = vmatpush.xpose.msra.mxu0 %v178
  %v180 = vand.u32 %v93, 4294901760
  %v181 = vsub.f32 %v93, %v180
  %v182 = vand.u32 %v181, 4294901760
  %v183 = vsub.f32 %v181, %v182
  %v184 = vand.u32 %v183, 4294901760
  %185 = vmatpush.xpose.msra.mxu0 %v184
  %v186 = vand.u32 %v90, 4294901760
  %v187 = vsub.f32 %v90, %v186
  %v188 = vand.u32 %v187, 4294901760
  %v189 = vsub.f32 %v187, %v188
  %v190 = vand.u32 %v189, 4294901760
  %191 = vmatpush.xpose.msra.mxu0 %v190
  %v192 = vand.u32 %v87, 4294901760
  %v193 = vsub.f32 %v87, %v192
  %v194 = vand.u32 %v193, 4294901760
  %v195 = vsub.f32 %v193, %v194
  %v196 = vand.u32 %v195, 4294901760
  %197 = vmatpush.xpose.msra.mxu0 %v196
  %v198 = vand.u32 %v84, 4294901760
  %v199 = vsub.f32 %v84, %v198
  %v200 = vand.u32 %v199, 4294901760
  %v201 = vsub.f32 %v199, %v200
  %v202 = vand.u32 %v201, 4294901760
  %203 = vmatpush.xpose.msra.mxu0 %v202
  %v204 = vand.u32 %v81, 4294901760
  %v205 = vsub.f32 %v81, %v204
  %v206 = vand.u32 %v205, 4294901760
  %v207 = vsub.f32 %v205, %v206
  %v208 = vand.u32 %v207, 4294901760
  %209 = vmatpush.xpose.msra.mxu0 %v208
  %v210 = vand.u32 %v78, 4294901760
  %v211 = vsub.f32 %v78, %v210
  %v212 = vand.u32 %v211, 4294901760
  %v213 = vsub.f32 %v211, %v212
  %v214 = vand.u32 %v213, 4294901760
  %215 = vmatpush.xpose.msra.mxu0 %v214
  %v216 = vand.u32 %v75, 4294901760
  %v217 = vsub.f32 %v75, %v216
  %v218 = vand.u32 %v217, 4294901760
  %v219 = vsub.f32 %v217, %v218
  %v220 = vand.u32 %v219, 4294901760
  %221 = vmatpush.xpose.msra.mxu0 %v220
  %v222 = vand.u32 %v72, 4294901760
  %v223 = vsub.f32 %v72, %v222
  %v224 = vand.u32 %v223, 4294901760
  %v225 = vsub.f32 %v223, %v224
  %v226 = vand.u32 %v225, 4294901760
  %227 = vmatpush.xpose.msra.mxu0 %v226
  %v228 = vand.u32 %v69, 4294901760
  %v229 = vsub.f32 %v69, %v228
  %v230 = vand.u32 %v229, 4294901760
  %v231 = vsub.f32 %v229, %v230
  %v232 = vand.u32 %v231, 4294901760
  %233 = vmatpush.xpose.msra.mxu0 %v232
  %v234 = vand.u32 %v66, 4294901760
  %v235 = vsub.f32 %v66, %v234
  %v236 = vand.u32 %v235, 4294901760
  %v237 = vsub.f32 %v235, %v236
  %v238 = vand.u32 %v237, 4294901760
  %239 = vmatpush.xpose.msra.mxu0 %v238
  %v240 = vand.u32 %v63, 4294901760
  %v241 = vsub.f32 %v63, %v240
  %v242 = vand.u32 %v241, 4294901760
  %v243 = vsub.f32 %v241, %v242
  %v244 = vand.u32 %v243, 4294901760
  %245 = vmatpush.xpose.msra.mxu0 %v244
  %v246 = vand.u32 %v60, 4294901760
  %v247 = vsub.f32 %v60, %v246
  %v248 = vand.u32 %v247, 4294901760
  %v249 = vsub.f32 %v247, %v248
  %v250 = vand.u32 %v249, 4294901760
  %251 = vmatpush.xpose.msra.mxu0 %v250
  %v252 = vand.u32 %v54, 4294901760
  %253 = vmatmul.f32.gmra.mxu0 %v252
  %v254 = vpop.f32.mrf.mxu0
  %v255 = vadd.f32 %v146, %v254
  %v256 = vand.u32 %v57, 4294901760
  %257 = vmatmul.f32.gmra.mxu0 %v256
  %v258 = vpop.f32.mrf.mxu0
  %v259 = vadd.f32 %v154, %v258
  %260 = vdwg.mxu0
  %v261 = vand.u32 %v105, 4294901760
  %v262 = vsub.f32 %v105, %v261
  %263 = vmatpush.xpose.msra.mxu0 %v262
  %v264 = vand.u32 %v102, 4294901760
  %v265 = vsub.f32 %v102, %v264
  %266 = vmatpush.xpose.msra.mxu0 %v265
  %v267 = vand.u32 %v99, 4294901760
  %v268 = vsub.f32 %v99, %v267
  %269 = vmatpush.xpose.msra.mxu0 %v268
  %v270 = vand.u32 %v96, 4294901760
  %v271 = vsub.f32 %v96, %v270
  %272 = vmatpush.xpose.msra.mxu0 %v271
  %v273 = vand.u32 %v93, 4294901760
  %v274 = vsub.f32 %v93, %v273
  %275 = vmatpush.xpose.msra.mxu0 %v274
  %v276 = vand.u32 %v90, 4294901760
  %v277 = vsub.f32 %v90, %v276
  %278 = vmatpush.xpose.msra.mxu0 %v277
  %v279 = vand.u32 %v87, 4294901760
  %v280 = vsub.f32 %v87, %v279
  %281 = vmatpush.xpose.msra.mxu0 %v280
  %v282 = vand.u32 %v84, 4294901760
  %v283 = vsub.f32 %v84, %v282
  %284 = vmatpush.xpose.msra.mxu0 %v283
  %v285 = vand.u32 %v81, 4294901760
  %v286 = vsub.f32 %v81, %v285
  %287 = vmatpush.xpose.msra.mxu0 %v286
  %v288 = vand.u32 %v78, 4294901760
  %v289 = vsub.f32 %v78, %v288
  %290 = vmatpush.xpose.msra.mxu0 %v289
  %v291 = vand.u32 %v75, 4294901760
  %v292 = vsub.f32 %v75, %v291
  %293 = vmatpush.xpose.msra.mxu0 %v292
  %v294 = vand.u32 %v72, 4294901760
  %v295 = vsub.f32 %v72, %v294
  %296 = vmatpush.xpose.msra.mxu0 %v295
  %v297 = vand.u32 %v69, 4294901760
  %v298 = vsub.f32 %v69, %v297
  %299 = vmatpush.xpose.msra.mxu0 %v298
  %v300 = vand.u32 %v66, 4294901760
  %v301 = vsub.f32 %v66, %v300
  %302 = vmatpush.xpose.msra.mxu0 %v301
  %v303 = vand.u32 %v63, 4294901760
  %v304 = vsub.f32 %v63, %v303
  %305 = vmatpush.xpose.msra.mxu0 %v304
  %v306 = vand.u32 %v60, 4294901760
  %v307 = vsub.f32 %v60, %v306
  %308 = vmatpush.xpose.msra.mxu0 %v307
  %v309 = vand.u32 %v54, 4294901760
  %v310 = vsub.f32 %v54, %v309
  %311 = vmatmul.f32.gmra.mxu0 %v310
  %v312 = vpop.f32.mrf.mxu0
  %v313 = vadd.f32 %v255, %v312
  %v314 = vand.u32 %v57, 4294901760
  %v315 = vsub.f32 %v57, %v314
  %316 = vmatmul.f32.gmra.mxu0 %v315
  %v317 = vpop.f32.mrf.mxu0
  %v318 = vadd.f32 %v259, %v317
  %319 = vdwg.mxu0
  %v320 = vand.u32 %v105, 4294901760
  %321 = vmatpush.xpose.msra.mxu0 %v320
  %v322 = vand.u32 %v102, 4294901760
  %323 = vmatpush.xpose.msra.mxu0 %v322
  %v324 = vand.u32 %v99, 4294901760
  %325 = vmatpush.xpose.msra.mxu0 %v324
  %v326 = vand.u32 %v96, 4294901760
  %327 = vmatpush.xpose.msra.mxu0 %v326
  %v328 = vand.u32 %v93, 4294901760
  %329 = vmatpush.xpose.msra.mxu0 %v328
  %v330 = vand.u32 %v90, 4294901760
  %331 = vmatpush.xpose.msra.mxu0 %v330
  %v332 = vand.u32 %v87, 4294901760
  %333 = vmatpush.xpose.msra.mxu0 %v332
  %v334 = vand.u32 %v84, 4294901760
  %335 = vmatpush.xpose.msra.mxu0 %v334
  %v336 = vand.u32 %v81, 4294901760
  %337 = vmatpush.xpose.msra.mxu0 %v336
  %v338 = vand.u32 %v78, 4294901760
  %339 = vmatpush.xpose.msra.mxu0 %v338
  %v340 = vand.u32 %v75, 4294901760
  %341 = vmatpush.xpose.msra.mxu0 %v340
  %v342 = vand.u32 %v72, 4294901760
  %343 = vmatpush.xpose.msra.mxu0 %v342
  %v344 = vand.u32 %v69, 4294901760
  %345 = vmatpush.xpose.msra.mxu0 %v344
  %v346 = vand.u32 %v66, 4294901760
  %347 = vmatpush.xpose.msra.mxu0 %v346
  %v348 = vand.u32 %v63, 4294901760
  %349 = vmatpush.xpose.msra.mxu0 %v348
  %v350 = vand.u32 %v60, 4294901760
  %351 = vmatpush.xpose.msra.mxu0 %v350
  %v352 = vand.u32 %v54, 4294901760
  %v353 = vsub.f32 %v54, %v352
  %v354 = vand.u32 %v353, 4294901760
  %355 = vmatmul.f32.gmra.mxu0 %v354
  %v356 = vpop.f32.mrf.mxu0
  %v357 = vadd.f32 %v313, %v356
  %v358 = vand.u32 %v57, 4294901760
  %v359 = vsub.f32 %v57, %v358
  %v360 = vand.u32 %v359, 4294901760
  %361 = vmatmul.f32.gmra.mxu0 %v360
  %v362 = vpop.f32.mrf.mxu0
  %v363 = vadd.f32 %v318, %v362
  %364 = vdwg.mxu0
  %v365 = vand.u32 %v105, 4294901760
  %v366 = vsub.f32 %v105, %v365
  %v367 = vand.u32 %v366, 4294901760
  %368 = vmatpush.xpose.msra.mxu0 %v367
  %v369 = vand.u32 %v102, 4294901760
  %v370 = vsub.f32 %v102, %v369
  %v371 = vand.u32 %v370, 4294901760
  %372 = vmatpush.xpose.msra.mxu0 %v371
  %v373 = vand.u32 %v99, 4294901760
  %v374 = vsub.f32 %v99, %v373
  %v375 = vand.u32 %v374, 4294901760
  %376 = vmatpush.xpose.msra.mxu0 %v375
  %v377 = vand.u32 %v96, 4294901760
  %v378 = vsub.f32 %v96, %v377
  %v379 = vand.u32 %v378, 4294901760
  %380 = vmatpush.xpose.msra.mxu0 %v379
  %v381 = vand.u32 %v93, 4294901760
  %v382 = vsub.f32 %v93, %v381
  %v383 = vand.u32 %v382, 4294901760
  %384 = vmatpush.xpose.msra.mxu0 %v383
  %v385 = vand.u32 %v90, 4294901760
  %v386 = vsub.f32 %v90, %v385
  %v387 = vand.u32 %v386, 4294901760
  %388 = vmatpush.xpose.msra.mxu0 %v387
  %v389 = vand.u32 %v87, 4294901760
  %v390 = vsub.f32 %v87, %v389
  %v391 = vand.u32 %v390, 4294901760
  %392 = vmatpush.xpose.msra.mxu0 %v391
  %v393 = vand.u32 %v84, 4294901760
  %v394 = vsub.f32 %v84, %v393
  %v395 = vand.u32 %v394, 4294901760
  %396 = vmatpush.xpose.msra.mxu0 %v395
  %v397 = vand.u32 %v81, 4294901760
  %v398 = vsub.f32 %v81, %v397
  %v399 = vand.u32 %v398, 4294901760
  %400 = vmatpush.xpose.msra.mxu0 %v399
  %v401 = vand.u32 %v78, 4294901760
  %v402 = vsub.f32 %v78, %v401
  %v403 = vand.u32 %v402, 4294901760
  %404 = vmatpush.xpose.msra.mxu0 %v403
  %v405 = vand.u32 %v75, 4294901760
  %v406 = vsub.f32 %v75, %v405
  %v407 = vand.u32 %v406, 4294901760
  %408 = vmatpush.xpose.msra.mxu0 %v407
  %v409 = vand.u32 %v72, 4294901760
  %v410 = vsub.f32 %v72, %v409
  %v411 = vand.u32 %v410, 4294901760
  %412 = vmatpush.xpose.msra.mxu0 %v411
  %v413 = vand.u32 %v69, 4294901760
  %v414 = vsub.f32 %v69, %v413
  %v415 = vand.u32 %v414, 4294901760
  %416 = vmatpush.xpose.msra.mxu0 %v415
  %v417 = vand.u32 %v66, 4294901760
  %v418 = vsub.f32 %v66, %v417
  %v419 = vand.u32 %v418, 4294901760
  %420 = vmatpush.xpose.msra.mxu0 %v419
  %v421 = vand.u32 %v63, 4294901760
  %v422 = vsub.f32 %v63, %v421
  %v423 = vand.u32 %v422, 4294901760
  %424 = vmatpush.xpose.msra.mxu0 %v423
  %v425 = vand.u32 %v60, 4294901760
  %v426 = vsub.f32 %v60, %v425
  %v427 = vand.u32 %v426, 4294901760
  %428 = vmatpush.xpose.msra.mxu0 %v427
  %v429 = vand.u32 %v54, 4294901760
  %430 = vmatmul.f32.gmra.mxu0 %v429
  %v431 = vpop.f32.mrf.mxu0
  %v432 = vadd.f32 %v357, %v431
  %v433 = vand.u32 %v57, 4294901760
  %434 = vmatmul.f32.gmra.mxu0 %v433
  %v435 = vpop.f32.mrf.mxu0
  %v436 = vadd.f32 %v363, %v435
  %437 = vdwg.mxu0
  %v438 = vand.u32 %v105, 4294901760
  %439 = vmatpush.xpose.msra.mxu0 %v438
  %v440 = vand.u32 %v102, 4294901760
  %441 = vmatpush.xpose.msra.mxu0 %v440
  %v442 = vand.u32 %v99, 4294901760
  %443 = vmatpush.xpose.msra.mxu0 %v442
  %v444 = vand.u32 %v96, 4294901760
  %445 = vmatpush.xpose.msra.mxu0 %v444
  %v446 = vand.u32 %v93, 4294901760
  %447 = vmatpush.xpose.msra.mxu0 %v446
  %v448 = vand.u32 %v90, 4294901760
  %449 = vmatpush.xpose.msra.mxu0 %v448
  %v450 = vand.u32 %v87, 4294901760
  %451 = vmatpush.xpose.msra.mxu0 %v450
  %v452 = vand.u32 %v84, 4294901760
  %453 = vmatpush.xpose.msra.mxu0 %v452
  %v454 = vand.u32 %v81, 4294901760
  %455 = vmatpush.xpose.msra.mxu0 %v454
  %v456 = vand.u32 %v78, 4294901760
  %457 = vmatpush.xpose.msra.mxu0 %v456
  %v458 = vand.u32 %v75, 4294901760
  %459 = vmatpush.xpose.msra.mxu0 %v458
  %v460 = vand.u32 %v72, 4294901760
  %461 = vmatpush.xpose.msra.mxu0 %v460
  %v462 = vand.u32 %v69, 4294901760
  %463 = vmatpush.xpose.msra.mxu0 %v462
  %v464 = vand.u32 %v66, 4294901760
  %465 = vmatpush.xpose.msra.mxu0 %v464
  %v466 = vand.u32 %v63, 4294901760
  %467 = vmatpush.xpose.msra.mxu0 %v466
  %v468 = vand.u32 %v60, 4294901760
  %469 = vmatpush.xpose.msra.mxu0 %v468
  %v470 = vand.u32 %v54, 4294901760
  %471 = vmatmul.f32.gmra.mxu0 %v470
  %v472 = vpop.f32.mrf.mxu0
  %v473 = vadd.f32 %v432, %v472
  %v474 = vand.u32 %v57, 4294901760
  %475 = vmatmul.f32.gmra.mxu0 %v474
  %v476 = vpop.f32.mrf.mxu0
  %v477 = vadd.f32 %v436, %v476
  %478 = vdwg.mxu0
  %v479 = vmax.f32 %v473, 0.0
  %v480 = vmax.f32 %v477, 0.0
  %482 = vset.pattern.permute.xlu0 0
  %483 = vperm.xlu0 %482, %v40
  %v484 = vpop.permute.xlu0 %483
  %487 = vset.pattern.permute.xlu0 0
  %488 = vperm.xlu0 %487, %v41
  %v489 = vpop.permute.xlu0 %488
  %v492 = vsel %vm52, %v35, 0
  %v495 = vsel %vm52, %v36, 0
  %497 = vmatpush.msra.mxu0 0.0
  %498 = vmatpush.msra.mxu0 0.0
  %499 = vmatpush.msra.mxu0 0.0
  %500 = vmatpush.msra.mxu0 0.0
  %501 = vmatpush.msra.mxu0 0.0
  %502 = vmatpush.msra.mxu0 0.0
  %503 = vmatpush.msra.mxu0 0.0
  %504 = vmatpush.msra.mxu0 0.0
  %505 = vmatpush.msra.mxu0 0.0
  %506 = vmatpush.msra.mxu0 0.0
  %507 = vmatpush.msra.mxu0 0.0
  %508 = vmatpush.msra.mxu0 0.0
  %509 = vmatpush.msra.mxu0 0.0
  %510 = vmatpush.msra.mxu0 0.0
  %v511 = vand.u32 %v480, 4294901760
  %512 = vmatpush.msra.mxu0 %v511
  %v513 = vand.u32 %v479, 4294901760
  %514 = vmatpush.msra.mxu0 %v513
  %v515 = vand.u32 %v492, 4294901760
  %v516 = vsub.f32 %v492, %v515
  %v517 = vand.u32 %v516, 4294901760
  %v518 = vsub.f32 %v516, %v517
  %v519 = vand.u32 %v518, 4294901760
  %520 = vmatmul.f32.gmra.mxu0 %v519
  %v521 = vpop.f32.mrf.mxu0
  %v522 = vadd.f32 %v484, %v521
  %v523 = vand.u32 %v495, 4294901760
  %v524 = vsub.f32 %v495, %v523
  %v525 = vand.u32 %v524, 4294901760
  %v526 = vsub.f32 %v524, %v525
  %v527 = vand.u32 %v526, 4294901760
  %528 = vmatmul.f32.gmra.mxu0 %v527
  %v529 = vpop.f32.mrf.mxu0
  %v530 = vadd.f32 %v489, %v529
  %531 = vdwg.mxu0
  %532 = vmatpush.msra.mxu0 0.0
  %533 = vmatpush.msra.mxu0 0.0
  %534 = vmatpush.msra.mxu0 0.0
  %535 = vmatpush.msra.mxu0 0.0
  %536 = vmatpush.msra.mxu0 0.0
  %537 = vmatpush.msra.mxu0 0.0
  %538 = vmatpush.msra.mxu0 0.0
  %539 = vmatpush.msra.mxu0 0.0
  %540 = vmatpush.msra.mxu0 0.0
  %541 = vmatpush.msra.mxu0 0.0
  %542 = vmatpush.msra.mxu0 0.0
  %543 = vmatpush.msra.mxu0 0.0
  %544 = vmatpush.msra.mxu0 0.0
  %545 = vmatpush.msra.mxu0 0.0
  %v546 = vand.u32 %v480, 4294901760
  %v547 = vsub.f32 %v480, %v546
  %v548 = vand.u32 %v547, 4294901760
  %v549 = vsub.f32 %v547, %v548
  %v550 = vand.u32 %v549, 4294901760
  %551 = vmatpush.msra.mxu0 %v550
  %v552 = vand.u32 %v479, 4294901760
  %v553 = vsub.f32 %v479, %v552
  %v554 = vand.u32 %v553, 4294901760
  %v555 = vsub.f32 %v553, %v554
  %v556 = vand.u32 %v555, 4294901760
  %557 = vmatpush.msra.mxu0 %v556
  %v558 = vand.u32 %v492, 4294901760
  %559 = vmatmul.f32.gmra.mxu0 %v558
  %v560 = vpop.f32.mrf.mxu0
  %v561 = vadd.f32 %v522, %v560
  %v562 = vand.u32 %v495, 4294901760
  %563 = vmatmul.f32.gmra.mxu0 %v562
  %v564 = vpop.f32.mrf.mxu0
  %v565 = vadd.f32 %v530, %v564
  %566 = vdwg.mxu0
  %567 = vmatpush.msra.mxu0 0.0
  %568 = vmatpush.msra.mxu0 0.0
  %569 = vmatpush.msra.mxu0 0.0
  %570 = vmatpush.msra.mxu0 0.0
  %571 = vmatpush.msra.mxu0 0.0
  %572 = vmatpush.msra.mxu0 0.0
  %573 = vmatpush.msra.mxu0 0.0
  %574 = vmatpush.msra.mxu0 0.0
  %575 = vmatpush.msra.mxu0 0.0
  %576 = vmatpush.msra.mxu0 0.0
  %577 = vmatpush.msra.mxu0 0.0
  %578 = vmatpush.msra.mxu0 0.0
  %579 = vmatpush.msra.mxu0 0.0
  %580 = vmatpush.msra.mxu0 0.0
  %v581 = vand.u32 %v480, 4294901760
  %v582 = vsub.f32 %v480, %v581
  %583 = vmatpush.msra.mxu0 %v582
  %v584 = vand.u32 %v479, 4294901760
  %v585 = vsub.f32 %v479, %v584
  %586 = vmatpush.msra.mxu0 %v585
  %v587 = vand.u32 %v492, 4294901760
  %v588 = vsub.f32 %v492, %v587
  %589 = vmatmul.f32.gmra.mxu0 %v588
  %v590 = vpop.f32.mrf.mxu0
  %v591 = vadd.f32 %v561, %v590
  %v592 = vand.u32 %v495, 4294901760
  %v593 = vsub.f32 %v495, %v592
  %594 = vmatmul.f32.gmra.mxu0 %v593
  %v595 = vpop.f32.mrf.mxu0
  %v596 = vadd.f32 %v565, %v595
  %597 = vdwg.mxu0
  %598 = vmatpush.msra.mxu0 0.0
  %599 = vmatpush.msra.mxu0 0.0
  %600 = vmatpush.msra.mxu0 0.0
  %601 = vmatpush.msra.mxu0 0.0
  %602 = vmatpush.msra.mxu0 0.0
  %603 = vmatpush.msra.mxu0 0.0
  %604 = vmatpush.msra.mxu0 0.0
  %605 = vmatpush.msra.mxu0 0.0
  %606 = vmatpush.msra.mxu0 0.0
  %607 = vmatpush.msra.mxu0 0.0
  %608 = vmatpush.msra.mxu0 0.0
  %609 = vmatpush.msra.mxu0 0.0
  %610 = vmatpush.msra.mxu0 0.0
  %611 = vmatpush.msra.mxu0 0.0
  %v612 = vand.u32 %v480, 4294901760
  %613 = vmatpush.msra.mxu0 %v612
  %v614 = vand.u32 %v479, 4294901760
  %615 = vmatpush.msra.mxu0 %v614
  %v616 = vand.u32 %v492, 4294901760
  %v617 = vsub.f32 %v492, %v616
  %v618 = vand.u32 %v617, 4294901760
  %619 = vmatmul.f32.gmra.mxu0 %v618
  %v620 = vpop.f32.mrf.mxu0
  %v621 = vadd.f32 %v591, %v620
  %v622 = vand.u32 %v495, 4294901760
  %v623 = vsub.f32 %v495, %v622
  %v624 = vand.u32 %v623, 4294901760
  %625 = vmatmul.f32.gmra.mxu0 %v624
  %v626 = vpop.f32.mrf.mxu0
  %v627 = vadd.f32 %v596, %v626
  %628 = vdwg.mxu0
  %629 = vmatpush.msra.mxu0 0.0
  %630 = vmatpush.msra.mxu0 0.0
  %631 = vmatpush.msra.mxu0 0.0
  %632 = vmatpush.msra.mxu0 0.0
  %633 = vmatpush.msra.mxu0 0.0
  %634 = vmatpush.msra.mxu0 0.0
  %635 = vmatpush.msra.mxu0 0.0
  %636 = vmatpush.msra.mxu0 0.0
  %637 = vmatpush.msra.mxu0 0.0
  %638 = vmatpush.msra.mxu0 0.0
  %639 = vmatpush.msra.mxu0 0.0
  %640 = vmatpush.msra.mxu0 0.0
  %641 = vmatpush.msra.mxu0 0.0
  %642 = vmatpush.msra.mxu0 0.0
  %v643 = vand.u32 %v480, 4294901760
  %v644 = vsub.f32 %v480, %v643
  %v645 = vand.u32 %v644, 4294901760
  %646 = vmatpush.msra.mxu0 %v645
  %v647 = vand.u32 %v479, 4294901760
  %v648 = vsub.f32 %v479, %v647
  %v649 = vand.u32 %v648, 4294901760
  %650 = vmatpush.msra.mxu0 %v649
  %v651 = vand.u32 %v492, 4294901760
  %652 = vmatmul.f32.gmra.mxu0 %v651
  %v653 = vpop.f32.mrf.mxu0
  %v654 = vadd.f32 %v621, %v653
  %v655 = vand.u32 %v495, 4294901760
  %656 = vmatmul.f32.gmra.mxu0 %v655
  %v657 = vpop.f32.mrf.mxu0
  %v658 = vadd.f32 %v627, %v657
  %659 = vdwg.mxu0
  %660 = vmatpush.msra.mxu0 0.0
  %661 = vmatpush.msra.mxu0 0.0
  %662 = vmatpush.msra.mxu0 0.0
  %663 = vmatpush.msra.mxu0 0.0
  %664 = vmatpush.msra.mxu0 0.0
  %665 = vmatpush.msra.mxu0 0.0
  %666 = vmatpush.msra.mxu0 0.0
  %667 = vmatpush.msra.mxu0 0.0
  %668 = vmatpush.msra.mxu0 0.0
  %669 = vmatpush.msra.mxu0 0.0
  %670 = vmatpush.msra.mxu0 0.0
  %671 = vmatpush.msra.mxu0 0.0
  %672 = vmatpush.msra.mxu0 0.0
  %673 = vmatpush.msra.mxu0 0.0
  %v674 = vand.u32 %v480, 4294901760
  %675 = vmatpush.msra.mxu0 %v674
  %v676 = vand.u32 %v479, 4294901760
  %677 = vmatpush.msra.mxu0 %v676
  %v678 = vand.u32 %v492, 4294901760
  %679 = vmatmul.f32.gmra.mxu0 %v678
  %v680 = vpop.f32.mrf.mxu0
  %v681 = vadd.f32 %v654, %v680
  %v682 = vand.u32 %v495, 4294901760
  %683 = vmatmul.f32.gmra.mxu0 %v682
  %v684 = vpop.f32.mrf.mxu0
  %v685 = vadd.f32 %v658, %v684
  %686 = vdwg.mxu0
  %v687 = vmax.f32 %v681, 0.0
  %v688 = vmax.f32 %v685, 0.0
  %v690 = vsel %vm52, %v37, 0
  %692 = vmatpush.msra.mxu0 0.0
  %693 = vmatpush.msra.mxu0 0.0
  %694 = vmatpush.msra.mxu0 0.0
  %695 = vmatpush.msra.mxu0 0.0
  %696 = vmatpush.msra.mxu0 0.0
  %697 = vmatpush.msra.mxu0 0.0
  %698 = vmatpush.msra.mxu0 0.0
  %699 = vmatpush.msra.mxu0 0.0
  %700 = vmatpush.msra.mxu0 0.0
  %701 = vmatpush.msra.mxu0 0.0
  %702 = vmatpush.msra.mxu0 0.0
  %703 = vmatpush.msra.mxu0 0.0
  %704 = vmatpush.msra.mxu0 0.0
  %705 = vmatpush.msra.mxu0 0.0
  %v706 = vand.u32 %v688, 4294901760
  %707 = vmatpush.msra.mxu0 %v706
  %v708 = vand.u32 %v687, 4294901760
  %709 = vmatpush.msra.mxu0 %v708
  %v710 = vand.u32 %v690, 4294901760
  %v711 = vsub.f32 %v690, %v710
  %v712 = vand.u32 %v711, 4294901760
  %v713 = vsub.f32 %v711, %v712
  %v714 = vand.u32 %v713, 4294901760
  %715 = vmatmul.f32.gmra.mxu0 %v714
  %v716 = vpop.f32.mrf.mxu0
  %v717 = vadd.f32 0.0, %v716
  %718 = vdwg.mxu0
  %719 = vmatpush.msra.mxu0 0.0
  %720 = vmatpush.msra.mxu0 0.0
  %721 = vmatpush.msra.mxu0 0.0
  %722 = vmatpush.msra.mxu0 0.0
  %723 = vmatpush.msra.mxu0 0.0
  %724 = vmatpush.msra.mxu0 0.0
  %725 = vmatpush.msra.mxu0 0.0
  %726 = vmatpush.msra.mxu0 0.0
  %727 = vmatpush.msra.mxu0 0.0
  %728 = vmatpush.msra.mxu0 0.0
  %729 = vmatpush.msra.mxu0 0.0
  %730 = vmatpush.msra.mxu0 0.0
  %731 = vmatpush.msra.mxu0 0.0
  %732 = vmatpush.msra.mxu0 0.0
  %v733 = vand.u32 %v688, 4294901760
  %v734 = vsub.f32 %v688, %v733
  %v735 = vand.u32 %v734, 4294901760
  %v736 = vsub.f32 %v734, %v735
  %v737 = vand.u32 %v736, 4294901760
  %738 = vmatpush.msra.mxu0 %v737
  %v739 = vand.u32 %v687, 4294901760
  %v740 = vsub.f32 %v687, %v739
  %v741 = vand.u32 %v740, 4294901760
  %v742 = vsub.f32 %v740, %v741
  %v743 = vand.u32 %v742, 4294901760
  %744 = vmatpush.msra.mxu0 %v743
  %v745 = vand.u32 %v690, 4294901760
  %746 = vmatmul.f32.gmra.mxu0 %v745
  %v747 = vpop.f32.mrf.mxu0
  %v748 = vadd.f32 %v717, %v747
  %749 = vdwg.mxu0
  %750 = vmatpush.msra.mxu0 0.0
  %751 = vmatpush.msra.mxu0 0.0
  %752 = vmatpush.msra.mxu0 0.0
  %753 = vmatpush.msra.mxu0 0.0
  %754 = vmatpush.msra.mxu0 0.0
  %755 = vmatpush.msra.mxu0 0.0
  %756 = vmatpush.msra.mxu0 0.0
  %757 = vmatpush.msra.mxu0 0.0
  %758 = vmatpush.msra.mxu0 0.0
  %759 = vmatpush.msra.mxu0 0.0
  %760 = vmatpush.msra.mxu0 0.0
  %761 = vmatpush.msra.mxu0 0.0
  %762 = vmatpush.msra.mxu0 0.0
  %763 = vmatpush.msra.mxu0 0.0
  %v764 = vand.u32 %v688, 4294901760
  %v765 = vsub.f32 %v688, %v764
  %766 = vmatpush.msra.mxu0 %v765
  %v767 = vand.u32 %v687, 4294901760
  %v768 = vsub.f32 %v687, %v767
  %769 = vmatpush.msra.mxu0 %v768
  %v770 = vand.u32 %v690, 4294901760
  %v771 = vsub.f32 %v690, %v770
  %772 = vmatmul.f32.gmra.mxu0 %v771
  %v773 = vpop.f32.mrf.mxu0
  %v774 = vadd.f32 %v748, %v773
  %775 = vdwg.mxu0
  %776 = vmatpush.msra.mxu0 0.0
  %777 = vmatpush.msra.mxu0 0.0
  %778 = vmatpush.msra.mxu0 0.0
  %779 = vmatpush.msra.mxu0 0.0
  %780 = vmatpush.msra.mxu0 0.0
  %781 = vmatpush.msra.mxu0 0.0
  %782 = vmatpush.msra.mxu0 0.0
  %783 = vmatpush.msra.mxu0 0.0
  %784 = vmatpush.msra.mxu0 0.0
  %785 = vmatpush.msra.mxu0 0.0
  %786 = vmatpush.msra.mxu0 0.0
  %787 = vmatpush.msra.mxu0 0.0
  %788 = vmatpush.msra.mxu0 0.0
  %789 = vmatpush.msra.mxu0 0.0
  %v790 = vand.u32 %v688, 4294901760
  %791 = vmatpush.msra.mxu0 %v790
  %v792 = vand.u32 %v687, 4294901760
  %793 = vmatpush.msra.mxu0 %v792
  %v794 = vand.u32 %v690, 4294901760
  %v795 = vsub.f32 %v690, %v794
  %v796 = vand.u32 %v795, 4294901760
  %797 = vmatmul.f32.gmra.mxu0 %v796
  %v798 = vpop.f32.mrf.mxu0
  %v799 = vadd.f32 %v774, %v798
  %800 = vdwg.mxu0
  %801 = vmatpush.msra.mxu0 0.0
  %802 = vmatpush.msra.mxu0 0.0
  %803 = vmatpush.msra.mxu0 0.0
  %804 = vmatpush.msra.mxu0 0.0
  %805 = vmatpush.msra.mxu0 0.0
  %806 = vmatpush.msra.mxu0 0.0
  %807 = vmatpush.msra.mxu0 0.0
  %808 = vmatpush.msra.mxu0 0.0
  %809 = vmatpush.msra.mxu0 0.0
  %810 = vmatpush.msra.mxu0 0.0
  %811 = vmatpush.msra.mxu0 0.0
  %812 = vmatpush.msra.mxu0 0.0
  %813 = vmatpush.msra.mxu0 0.0
  %814 = vmatpush.msra.mxu0 0.0
  %v815 = vand.u32 %v688, 4294901760
  %v816 = vsub.f32 %v688, %v815
  %v817 = vand.u32 %v816, 4294901760
  %818 = vmatpush.msra.mxu0 %v817
  %v819 = vand.u32 %v687, 4294901760
  %v820 = vsub.f32 %v687, %v819
  %v821 = vand.u32 %v820, 4294901760
  %822 = vmatpush.msra.mxu0 %v821
  %v823 = vand.u32 %v690, 4294901760
  %824 = vmatmul.f32.gmra.mxu0 %v823
  %v825 = vpop.f32.mrf.mxu0
  %v826 = vadd.f32 %v799, %v825
  %827 = vdwg.mxu0
  %828 = vmatpush.msra.mxu0 0.0
  %829 = vmatpush.msra.mxu0 0.0
  %830 = vmatpush.msra.mxu0 0.0
  %831 = vmatpush.msra.mxu0 0.0
  %832 = vmatpush.msra.mxu0 0.0
  %833 = vmatpush.msra.mxu0 0.0
  %834 = vmatpush.msra.mxu0 0.0
  %835 = vmatpush.msra.mxu0 0.0
  %836 = vmatpush.msra.mxu0 0.0
  %837 = vmatpush.msra.mxu0 0.0
  %838 = vmatpush.msra.mxu0 0.0
  %839 = vmatpush.msra.mxu0 0.0
  %840 = vmatpush.msra.mxu0 0.0
  %841 = vmatpush.msra.mxu0 0.0
  %v842 = vand.u32 %v688, 4294901760
  %843 = vmatpush.msra.mxu0 %v842
  %v844 = vand.u32 %v687, 4294901760
  %845 = vmatpush.msra.mxu0 %v844
  %v846 = vand.u32 %v690, 4294901760
  %847 = vmatmul.f32.gmra.mxu0 %v846
  %v848 = vpop.f32.mrf.mxu0
  %v849 = vadd.f32 %v826, %v848
  %850 = vdwg.mxu0
  %851 = vxpose.xlu0.b32.start [1/16] %v849, 128
  %852 = vxpose.xlu0.b32.cont [2/16] 0.0, 128
  %853 = vxpose.xlu0.b32.cont [3/16] 0.0, 128
  %854 = vxpose.xlu0.b32.cont [4/16] 0.0, 128
  %855 = vxpose.xlu0.b32.cont [5/16] 0.0, 128
  %856 = vxpose.xlu0.b32.cont [6/16] 0.0, 128
  %857 = vxpose.xlu0.b32.cont [7/16] 0.0, 128
  %858 = vxpose.xlu0.b32.cont [8/16] 0.0, 128
  %859 = vxpose.xlu0.b32.cont [9/16] 0.0, 128
  %860 = vxpose.xlu0.b32.cont [10/16] 0.0, 128
  %861 = vxpose.xlu0.b32.cont [11/16] 0.0, 128
  %862 = vxpose.xlu0.b32.cont [12/16] 0.0, 128
  %863 = vxpose.xlu0.b32.cont [13/16] 0.0, 128
  %864 = vxpose.xlu0.b32.cont [14/16] 0.0, 128
  %865 = vxpose.xlu0.b32.cont [15/16] 0.0, 128
  %866 = vxpose.xlu0.b32.end [16/16] 0.0, 128
  %v867 = vpop.trf.xlu0
  %v868 = vpop.trf.xlu0
  %v869 = vpop.trf.xlu0
  %v870 = vpop.trf.xlu0
  %v871 = vpop.trf.xlu0
  %v872 = vpop.trf.xlu0
  %v873 = vpop.trf.xlu0
  %v874 = vpop.trf.xlu0
  %v875 = vpop.trf.xlu0
  %v876 = vpop.trf.xlu0
  %v877 = vpop.trf.xlu0
  %v878 = vpop.trf.xlu0
  %v879 = vpop.trf.xlu0
  %v880 = vpop.trf.xlu0
  %v881 = vpop.trf.xlu0
  %v882 = vpop.trf.xlu0
  %v883 = vld [vmem:[%s3] sm:$0x1]
  %v885 = vperm.slane %v883, 0
  %v887 = vadd.f32 %v867, %v885
  %v888 = vadd.f32 %v868, %v885
  %v889 = vadd.f32 %v869, %v885
  %v890 = vadd.f32 %v870, %v885
  %v891 = vadd.f32 %v871, %v885
  %v892 = vadd.f32 %v872, %v885
  %v893 = vadd.f32 %v873, %v885
  %v894 = vadd.f32 %v874, %v885
  %v895 = vadd.f32 %v875, %v885
  %v896 = vadd.f32 %v876, %v885
  %v897 = vadd.f32 %v877, %v885
  %v898 = vadd.f32 %v878, %v885
  %v899 = vadd.f32 %v879, %v885
  %v900 = vadd.f32 %v880, %v885
  %v901 = vadd.f32 %v881, %v885
  %v902 = vadd.f32 %v882, %v885
  %vm903 = vcmask 31744
  %904 = vst.msk [vmem:[%s4] sm:$0xff] %vm903, %v887
  %905 = vst.msk [vmem:[%s4 + $0x8] sm:$0xff] %vm903, %v888
  %906 = vst.msk [vmem:[%s4 + $0x10] sm:$0xff] %vm903, %v889
  %907 = vst.msk [vmem:[%s4 + $0x18] sm:$0xff] %vm903, %v890
  %908 = vst.msk [vmem:[%s4 + $0x20] sm:$0xff] %vm903, %v891
  %909 = vst.msk [vmem:[%s4 + $0x28] sm:$0xff] %vm903, %v892
  %910 = vst.msk [vmem:[%s4 + $0x30] sm:$0xff] %vm903, %v893
  %911 = vst.msk [vmem:[%s4 + $0x38] sm:$0xff] %vm903, %v894
  %912 = vst.msk [vmem:[%s4 + $0x40] sm:$0xff] %vm903, %v895
  %913 = vst.msk [vmem:[%s4 + $0x48] sm:$0xff] %vm903, %v896
  %914 = vst.msk [vmem:[%s4 + $0x50] sm:$0xff] %vm903, %v897
  %915 = vst.msk [vmem:[%s4 + $0x58] sm:$0xff] %vm903, %v898
  %916 = vst.msk [vmem:[%s4 + $0x60] sm:$0xff] %vm903, %v899
  %917 = vst.msk [vmem:[%s4 + $0x68] sm:$0xff] %vm903, %v900
  %918 = vst.msk [vmem:[%s4 + $0x70] sm:$0xff] %vm903, %v901
  %919 = vst.msk [vmem:[%s4 + $0x78] sm:$0xff] %vm903, %v902
  // Predicated region
  $region18: #{tpu_custom_call.1} parent=0 // pred_check
    _
  $region19: #{tpu_custom_call.1} parent=0 // pred_check_branch
    %921 = sbr.rel (0) target = $region21
  $region20: #{tpu_custom_call.1} parent=0 // pred_region
    _
  $region21: #{tpu_custom_call.1} parent=0 // pred_fallthru
    _
  // Predicated region
  $region22: #{tpu_custom_call.1} parent=0 // pred_check
    _
  $region23: #{tpu_custom_call.1} parent=0 // pred_check_branch
    %923 = sbr.rel (0) target = $region25
  $region24: #{tpu_custom_call.1} parent=0 // pred_region
    _
  $region25: #{tpu_custom_call.1} parent=0 // pred_fallthru
    _

</llo_original>
